<compile_context>
chip_gen: v7x
topology: tpu7x:2x2x1
jax: 0.10.0
libtpu: 0.0.40
codegen_flags: <defaults>
</compile_context>

<pallas_src>
import functools

import jax
import jax.numpy as jnp
from jax.experimental import pallas as pl
from jax.experimental.pallas import tpu as pltpu

_LANE = 128


def _round_up(x, m):
    return (x + m - 1) // m * m


def _independent_attention_kernel(seq1_ref, seq2_ref, w_ref, b_ref, ctx_ref,
                                  out1_ref, out2_ref, *, e1, e2, e_pad):
    """Both attentions in one kernel invocation, fully VMEM-resident.

    seq1_ref: (a,  e1)        sequence-1 encodings (unpadded)
    seq2_ref: (b,  e2)        sequence-2 encodings (unpadded)
    w_ref:    (c,  2*e_pad)   both context->query projections, pre-transposed & lane-padded
    b_ref:    (1,  2*e_pad)   both projection biases, lane-padded
    ctx_ref:  (c,  1)         shared context vector (as a column)
    out1_ref: (1,  e1)        attended encoding for sequence 1
    out2_ref: (1,  e2)        attended encoding for sequence 2
    """
    w = w_ref[...].astype(jnp.float32)            # (c, 2*e_pad)
    b = b_ref[...].astype(jnp.float32)            # (1, 2*e_pad)
    ctx = ctx_ref[...].astype(jnp.float32)        # (c, 1)

    # Fused query projection for BOTH attentions at once. Done as a VPU
    # broadcast-multiply + sublane reduce: exact f32 (no MXU bf16 passes), and at
    # M=1 the MXU would only be a sliver with fill/drain overhead anyway.
    q_both = jnp.sum(w * ctx, axis=0, keepdims=True) + b     # (1, 2*e_pad)

    def _attend(seq_ref, query, out_ref):
        seq = seq_ref[...].astype(jnp.float32)                    # (n, e)
        # logits: VPU broadcast-multiply + lane reduce (no degenerate MXU matvec).
        logits = jnp.sum(seq * query, axis=-1, keepdims=True)     # (n, 1)
        # Numerically stable softmax over the sequence axis, exact division.
        m = jnp.max(logits, axis=0, keepdims=True)
        p = jnp.exp(logits - m)
        weights = p / jnp.sum(p, axis=0, keepdims=True)           # (n, 1)
        # attended = sum_n weights_n * seq_ne
        out_ref[...] = jnp.sum(weights * seq, axis=0,
                               keepdims=True).astype(out_ref.dtype)

    # Per-attention query slices fall on vreg-aligned lane offsets (0 and e_pad=128k).
    _attend(seq1_ref, q_both[:, :e1], out1_ref)
    _attend(seq2_ref, q_both[:, e_pad:e_pad + e2], out2_ref)


def _forward(seq1_ae, seq2_be, context_c, w_cat, b_cat, *, e1, e2, e_pad):
    kernel = functools.partial(_independent_attention_kernel,
                               e1=e1, e2=e2, e_pad=e_pad)
    ctx_col = context_c.reshape(-1, 1)            # (c, 1)
    vmem = pl.BlockSpec(memory_space=pltpu.MemorySpace.VMEM)
    out1, out2 = pl.pallas_call(
        kernel,
        out_shape=(jax.ShapeDtypeStruct((1, e1), seq1_ae.dtype),
                   jax.ShapeDtypeStruct((1, e2), seq2_be.dtype)),
        in_specs=[vmem, vmem, vmem, vmem, vmem],
        out_specs=(vmem, vmem),
    )(seq1_ae, seq2_be, w_cat, b_cat, ctx_col)
    return out1[0], out2[0]


def _init_linear(key, in_features, out_features, dtype=jnp.float32):
    """Deterministic init matching torch.nn.Linear default (uniform +-1/sqrt(fan_in)).

    Returns weight pre-transposed to (in_features, out_features) plus bias (out_features,).
    """
    kw, kb = jax.random.split(key)
    bound = 1.0 / (in_features ** 0.5)
    w = jax.random.uniform(kw, (in_features, out_features), dtype, -bound, bound)
    b = jax.random.uniform(kb, (out_features,), dtype, -bound, bound)
    return w, b


class IndependentAttentionPallas:
    """Attend to both sequences separately (forward-only, single fused Pallas call)."""

    def __init__(self, seq1_size, seq2_size, context_size, key):
        k1, k2 = jax.random.split(key)
        self.w1, self.b1 = _init_linear(k1, context_size, seq1_size)
        self.w2, self.b2 = _init_linear(k2, context_size, seq2_size)
        self.seq1_size = seq1_size
        self.seq2_size = seq2_size
        self.context_size = context_size

        # Pre-pad & concatenate both projections ONCE so the kernel does a single fused
        # query projection; each segment is padded to a 128-lane boundary so the per-attention
        # query slice is vreg-aligned. (Padded lanes contribute exact zeros.)
        e_pad = _round_up(max(seq1_size, seq2_size), _LANE)
        self.e_pad = e_pad
        w_cat = jnp.zeros((context_size, 2 * e_pad), jnp.float32)
        w_cat = w_cat.at[:, :seq1_size].set(self.w1)
        w_cat = w_cat.at[:, e_pad:e_pad + seq2_size].set(self.w2)
        b_cat = jnp.zeros((1, 2 * e_pad), jnp.float32)
        b_cat = b_cat.at[:, :seq1_size].set(self.b1)
        b_cat = b_cat.at[:, e_pad:e_pad + seq2_size].set(self.b2)
        self.w_cat = w_cat
        self.b_cat = b_cat

        # One jit around (reshape + pallas_call + output squeeze): no stray host-side
        # pad/stack/slice dispatches per call.
        self._jit_forward = jax.jit(
            functools.partial(_forward, e1=seq1_size, e2=seq2_size, e_pad=e_pad))

    def __call__(self, seq1_ae, seq2_be, context_c):
        return self._jit_forward(seq1_ae, seq2_be, context_c, self.w_cat, self.b_cat)


def _attention_ref(seq, w, b, ctx):
    # Full-precision pure-JAX reference (HIGHEST so the reference matmuls are not
    # single-pass bf16 on TPU).
    query = jnp.dot(ctx, w, precision=jax.lax.Precision.HIGHEST) + b
    logits = jnp.dot(seq, query, precision=jax.lax.Precision.HIGHEST)
    weights = jax.nn.softmax(logits)
    return jnp.dot(weights, seq, precision=jax.lax.Precision.HIGHEST)


if __name__ == "__main__":
    key = jax.random.PRNGKey(0)
    k_params, k1, k2, k3 = jax.random.split(key, 4)

    a, b_len = 8, 16          # sequence lengths
    e1, e2 = 32, 64           # per-sequence encoding sizes (seq1_size, seq2_size)
    c = 48                    # context size

    seq1_ae = jax.random.normal(k1, (a, e1), jnp.float32)
    seq2_be = jax.random.normal(k2, (b_len, e2), jnp.float32)
    context_c = jax.random.normal(k3, (c,), jnp.float32)

    module = IndependentAttentionPallas(e1, e2, c, k_params)
    att1, att2 = module(seq1_ae, seq2_be, context_c)
    jax.block_until_ready((att1, att2))

    ref1 = _attention_ref(seq1_ae, module.w1, module.b1, context_c)
    ref2 = _attention_ref(seq2_be, module.w2, module.b2, context_c)
    assert att1.shape == (e1,) and att2.shape == (e2,)
    # Exact division + full-f32 VPU projection: expected error ~1e-6; 1e-4 is ample margin.
    assert jnp.allclose(att1, ref1, atol=1e-4, rtol=1e-4), jnp.max(jnp.abs(att1 - ref1))
    assert jnp.allclose(att2, ref2, atol=1e-4, rtol=1e-4), jnp.max(jnp.abs(att2 - ref2))

    print("KERNEL_OK")
</pallas_src>

<mosaic_0001>
module attributes {stable_mosaic.version = 11 : i64} {
  func.func @_independent_attention_kernel(%arg0: memref<8x32xf32, #tpu.memory_space<vmem>>, %arg1: memref<16x64xf32, #tpu.memory_space<vmem>>, %arg2: memref<48x256xf32, #tpu.memory_space<vmem>>, %arg3: memref<1x256xf32, #tpu.memory_space<vmem>>, %arg4: memref<48x1xf32, #tpu.memory_space<vmem>>, %arg5: memref<1x32xf32, #tpu.memory_space<vmem>>, %arg6: memref<1x64xf32, #tpu.memory_space<vmem>>) attributes {dimension_semantics = [], scalar_prefetch = 0 : i64, scratch_operands = 0 : i64, tpu.core_type = #tpu.core_type<tc>} {
    %c0 = arith.constant 0 : index
    %c0_0 = arith.constant 0 : index
    %0 = vector.load %arg2[%c0, %c0_0] : memref<48x256xf32, #tpu.memory_space<vmem>>, vector<48x256xf32>
    %c0_1 = arith.constant 0 : index
    %c0_2 = arith.constant 0 : index
    %1 = vector.load %arg3[%c0_1, %c0_2] : memref<1x256xf32, #tpu.memory_space<vmem>>, vector<1x256xf32>
    %c0_3 = arith.constant 0 : index
    %c0_4 = arith.constant 0 : index
    %2 = vector.load %arg4[%c0_3, %c0_4] : memref<48x1xf32, #tpu.memory_space<vmem>>, vector<48x1xf32>
    %3 = vector.broadcast %2 : vector<48x1xf32> to vector<48x256xf32>
    %4 = arith.mulf %0, %3 : vector<48x256xf32>
    %cst = arith.constant dense<0.000000e+00> : vector<256xf32>
    %5 = vector.multi_reduction <add>, %4, %cst [0] : vector<48x256xf32> to vector<256xf32>
    %6 = vector.shape_cast %5 : vector<256xf32> to vector<1x256xf32>
    %7 = arith.addf %6, %1 : vector<1x256xf32>
    %8 = vector.extract_strided_slice %7 {offsets = [0, 0], sizes = [1, 32], strides = [1, 1]} : vector<1x256xf32> to vector<1x32xf32>
    %c0_5 = arith.constant 0 : index
    %c0_6 = arith.constant 0 : index
    %9 = vector.load %arg0[%c0_5, %c0_6] : memref<8x32xf32, #tpu.memory_space<vmem>>, vector<8x32xf32>
    %10 = vector.broadcast %8 : vector<1x32xf32> to vector<8x32xf32>
    %11 = arith.mulf %9, %10 : vector<8x32xf32>
    %cst_7 = arith.constant dense<0.000000e+00> : vector<8xf32>
    %12 = vector.multi_reduction <add>, %11, %cst_7 [1] : vector<8x32xf32> to vector<8xf32>
    %13 = vector.shape_cast %12 : vector<8xf32> to vector<8x1xf32>
    %cst_8 = arith.constant dense<0xFF800000> : vector<1xf32>
    %14 = vector.multi_reduction <maximumf>, %13, %cst_8 [0] : vector<8x1xf32> to vector<1xf32>
    %15 = vector.shape_cast %14 : vector<1xf32> to vector<1x1xf32>
    %16 = vector.broadcast %15 : vector<1x1xf32> to vector<8x1xf32>
    %17 = arith.subf %13, %16 : vector<8x1xf32>
    %18 = math.exp %17 : vector<8x1xf32>
    %cst_9 = arith.constant dense<0.000000e+00> : vector<1xf32>
    %19 = vector.multi_reduction <add>, %18, %cst_9 [0] : vector<8x1xf32> to vector<1xf32>
    %20 = vector.shape_cast %19 : vector<1xf32> to vector<1x1xf32>
    %21 = vector.broadcast %20 : vector<1x1xf32> to vector<8x1xf32>
    %22 = arith.divf %18, %21 : vector<8x1xf32>
    %23 = vector.broadcast %22 : vector<8x1xf32> to vector<8x32xf32>
    %24 = arith.mulf %23, %9 : vector<8x32xf32>
    %cst_10 = arith.constant dense<0.000000e+00> : vector<32xf32>
    %25 = vector.multi_reduction <add>, %24, %cst_10 [0] : vector<8x32xf32> to vector<32xf32>
    %26 = vector.shape_cast %25 : vector<32xf32> to vector<1x32xf32>
    %c0_11 = arith.constant 0 : index
    %c0_12 = arith.constant 0 : index
    %27 = vector.load %arg5[%c0_11, %c0_12] : memref<1x32xf32, #tpu.memory_space<vmem>>, vector<1x32xf32>
    tpu.vector_store %arg5[%c0_11, %c0_12], %26 {strides = array<i32>} : memref<1x32xf32, #tpu.memory_space<vmem>>, vector<1x32xf32>,
    %28 = vector.extract_strided_slice %7 {offsets = [0, 128], sizes = [1, 64], strides = [1, 1]} : vector<1x256xf32> to vector<1x64xf32>
    %c0_13 = arith.constant 0 : index
    %c0_14 = arith.constant 0 : index
    %29 = vector.load %arg1[%c0_13, %c0_14] : memref<16x64xf32, #tpu.memory_space<vmem>>, vector<16x64xf32>
    %30 = vector.broadcast %28 : vector<1x64xf32> to vector<16x64xf32>
    %31 = arith.mulf %29, %30 : vector<16x64xf32>
    %cst_15 = arith.constant dense<0.000000e+00> : vector<16xf32>
    %32 = vector.multi_reduction <add>, %31, %cst_15 [1] : vector<16x64xf32> to vector<16xf32>
    %33 = vector.shape_cast %32 : vector<16xf32> to vector<16x1xf32>
    %cst_16 = arith.constant dense<0xFF800000> : vector<1xf32>
    %34 = vector.multi_reduction <maximumf>, %33, %cst_16 [0] : vector<16x1xf32> to vector<1xf32>
    %35 = vector.shape_cast %34 : vector<1xf32> to vector<1x1xf32>
    %36 = vector.broadcast %35 : vector<1x1xf32> to vector<16x1xf32>
    %37 = arith.subf %33, %36 : vector<16x1xf32>
    %38 = math.exp %37 : vector<16x1xf32>
    %cst_17 = arith.constant dense<0.000000e+00> : vector<1xf32>
    %39 = vector.multi_reduction <add>, %38, %cst_17 [0] : vector<16x1xf32> to vector<1xf32>
    %40 = vector.shape_cast %39 : vector<1xf32> to vector<1x1xf32>
    %41 = vector.broadcast %40 : vector<1x1xf32> to vector<16x1xf32>
    %42 = arith.divf %38, %41 : vector<16x1xf32>
    %43 = vector.broadcast %42 : vector<16x1xf32> to vector<16x64xf32>
    %44 = arith.mulf %43, %29 : vector<16x64xf32>
    %cst_18 = arith.constant dense<0.000000e+00> : vector<64xf32>
    %45 = vector.multi_reduction <add>, %44, %cst_18 [0] : vector<16x64xf32> to vector<64xf32>
    %46 = vector.shape_cast %45 : vector<64xf32> to vector<1x64xf32>
    %c0_19 = arith.constant 0 : index
    %c0_20 = arith.constant 0 : index
    %47 = vector.load %arg6[%c0_19, %c0_20] : memref<1x64xf32, #tpu.memory_space<vmem>>, vector<1x64xf32>
    tpu.vector_store %arg6[%c0_19, %c0_20], %46 {strides = array<i32>} : memref<1x64xf32, #tpu.memory_space<vmem>>, vector<1x64xf32>,
    return
  }
}

</mosaic_0001>

<llo_original>
// kernel: _forward.1
$region0: #{_forward.1}
  #allocation0 [shape = 'u32[]', space=smem, size = 0x4, offset = 0x4, fixed_abs, tag = 'smem constant byte address 0x4 - core index']
  #allocation1 [shape = 'u32[144,128]{1,0:T(1,128)}', space=vmem, size = 0x12000, scoped, tag = 'internal scratch']
  %s0 = inlined_call_operand.vmem [shape: f32[8,32], index: 0, kind: input, shape index: {}]
  %s1 = inlined_call_operand.vmem [shape: f32[16,64], index: 1, kind: input, shape index: {}]
  %s2 = inlined_call_operand.hbm [shape: f32[48,256], index: 2, kind: input, shape index: {}]
  %s3 = inlined_call_operand.vmem [shape: f32[1,256], index: 3, kind: input, shape index: {}]
  %s4 = inlined_call_operand.vmem [shape: f32[48,1], index: 4, kind: input, shape index: {}]
  %s5 = inlined_call_operand.hbm [shape: f32[1,32], index: 5, kind: output, shape index: {0}]
  %s6 = inlined_call_operand.hbm [shape: f32[1,64], index: 6, kind: output, shape index: {1}]
  %7 = xla_tuple %s5, %s6
  %s8 = sld [smem:[#allocation0]]
  $region42: #{_forward.1} parent=0
    _
  %s10 = ssub.s32 1, %s8
  %s11 = scalar_select 0, %s10, %s8
  $region1: #{_forward.1} parent=0
    #allocation2 [shape = 'u8[49152]{0}', space=vmem, size = 0xc000, scoped, tag = 'input window, operand 2, single buffered']
    #allocation3 [shape = 's32[1]{0}', space=sflag, size = 0x4, scoped, tag = 'scoped memory for _forward.1']
    #allocation4 [shape = 's32[1]{0}', space=sflag, size = 0x4, scoped, tag = 'scoped memory for _forward.1']
    #allocation5 [shape = 'u8[512]{0}', space=vmem, size = 0x400, scoped, tag = 'output window, operand 0, single buffered']
    #allocation6 [shape = 'u8[512]{0}', space=vmem, size = 0x400, scoped, tag = 'output window, operand 1, single buffered']
    #allocation7 [shape = 's32[1]{0}', space=sflag, size = 0x4, scoped, tag = 'scoped memory for _forward.1']
    %12 = vsyncpa [#allocation3], 0
    %13 = vsyncpa [#allocation4], 0
    %14 = vsyncpa [#allocation7], 0
    // Predicated region
    $region2: #{_forward.1} parent=1 // pred_check
      _
    $region3: #{_forward.1} parent=1 // pred_check_branch
      %16 = sbr.rel (0) target = $region5
    $region4: #{_forward.1} parent=1 // pred_region
      _
    $region5: #{_forward.1} parent=1 // pred_fallthru
      _
    // Predicated region
    $region6: #{_forward.1} parent=1 // pred_check
      _
    $region7: #{_forward.1} parent=1 // pred_check_branch
      %18 = sbr.rel (0) target = $region9
    $region8: #{_forward.1} parent=1 // pred_region
      _
    $region9: #{_forward.1} parent=1 // pred_fallthru
      _
    // Predicated region
    $region10: #{_forward.1} parent=1 // pred_check
      _
    $region11: #{_forward.1} parent=1 // pred_check_branch
      %20 = sbr.rel (0) target = $region13
    $region12: #{_forward.1} parent=1 // pred_region
      %s22 = ssub.s32 1536, 1536
      %23 = vsyncadd [#allocation3], %s22
      %s24 = sshll.u32 [#allocation2], 4
      %s25 = int_to_ptr.vmem [resolvable:$true] %s24
      %30 = dma.hbm_to_vmem [thread:$0]  %s2, 1536, %s25, [#allocation3], 256, 256, 16
    $region13: #{_forward.1} parent=1 // pred_fallthru
      _
    // Predicated region
    $region14: #{_forward.1} parent=1 // pred_check
      _
    $region15: #{_forward.1} parent=1 // pred_check_branch
      %32 = sbr.rel (0) target = $region17
    $region16: #{_forward.1} parent=1 // pred_region
      _
    $region17: #{_forward.1} parent=1 // pred_fallthru
      _
    // Predicated region
    $region18: #{_forward.1} parent=1 // pred_check
      _
    $region19: #{_forward.1} parent=1 // pred_check_branch
      %34 = sbr.rel (0) target = $region21
    $region20: #{_forward.1} parent=1 // pred_region
      _
    $region21: #{_forward.1} parent=1 // pred_fallthru
      _
    // Predicated region
    $region22: #{_forward.1} parent=1 // pred_check
      _
    $region23: #{_forward.1} parent=1 // pred_check_branch
      %36 = sbr.rel (0) target = $region25
    $region24: #{_forward.1} parent=1 // pred_region
      %37 = dma.done [#allocation3], 1536
    $region25: #{_forward.1} parent=1 // pred_fallthru
      _
    %v38 = vld [vmem:[#allocation2] sm:$0xff]
    %v39 = vld [vmem:[#allocation2 + $0x8] sm:$0xff]
    %v40 = vld [vmem:[#allocation2 + $0x10] sm:$0xff]
    %v41 = vld [vmem:[#allocation2 + $0x18] sm:$0xff]
    %v42 = vld [vmem:[#allocation2 + $0x20] sm:$0xff]
    %v43 = vld [vmem:[#allocation2 + $0x28] sm:$0xff]
    %v44 = vld [vmem:[#allocation2 + $0x30] sm:$0xff]
    %v45 = vld [vmem:[#allocation2 + $0x38] sm:$0xff]
    %v46 = vld [vmem:[#allocation2 + $0x40] sm:$0xff]
    %v47 = vld [vmem:[#allocation2 + $0x48] sm:$0xff]
    %v48 = vld [vmem:[#allocation2 + $0x50] sm:$0xff]
    %v49 = vld [vmem:[#allocation2 + $0x58] sm:$0xff]
    %v50 = vld [vmem:[%s3] sm:$0x3]
    %v51 = vld [vmem:[%s4] sm:$0xff]
    %v52 = vld [vmem:[%s4 + $0x8] sm:$0xff]
    %v53 = vld [vmem:[%s4 + $0x10] sm:$0xff]
    %v54 = vld [vmem:[%s4 + $0x18] sm:$0xff]
    %v55 = vld [vmem:[%s4 + $0x20] sm:$0xff]
    %v56 = vld [vmem:[%s4 + $0x28] sm:$0xff]
    %58 = vset.pattern.permute.xlu0 0
    %59 = vperm.xlu0 %58, %v51
    %v60 = vpop.permute.xlu0 %59
    %63 = vset.pattern.permute.xlu0 0
    %64 = vperm.xlu0 %63, %v52
    %v65 = vpop.permute.xlu0 %64
    %68 = vset.pattern.permute.xlu0 0
    %69 = vperm.xlu0 %68, %v53
    %v70 = vpop.permute.xlu0 %69
    %73 = vset.pattern.permute.xlu0 0
    %74 = vperm.xlu0 %73, %v54
    %v75 = vpop.permute.xlu0 %74
    %78 = vset.pattern.permute.xlu0 0
    %79 = vperm.xlu0 %78, %v55
    %v80 = vpop.permute.xlu0 %79
    %83 = vset.pattern.permute.xlu0 0
    %84 = vperm.xlu0 %83, %v56
    %v85 = vpop.permute.xlu0 %84
    %v87 = vmul.f32 %v38, %v60
    %v88 = vmul.f32 %v39, %v60
    %v89 = vmul.f32 %v40, %v65
    %v90 = vmul.f32 %v41, %v65
    %v91 = vmul.f32 %v42, %v70
    %v92 = vmul.f32 %v43, %v70
    %v93 = vmul.f32 %v44, %v75
    %v94 = vmul.f32 %v45, %v75
    %v95 = vmul.f32 %v46, %v80
    %v96 = vmul.f32 %v47, %v80
    %v97 = vmul.f32 %v48, %v85
    %v98 = vmul.f32 %v49, %v85
    %v99 = vadd.f32 %v87, %v89
    %v100 = vadd.f32 %v99, %v91
    %v101 = vadd.f32 %v100, %v93
    %v102 = vadd.f32 %v101, %v95
    %v103 = vadd.f32 %v102, %v97
    %v104 = vrot.slane %v103, 4
    %v105 = vadd.f32 %v103, %v104
    %v106 = vrot.slane %v105, 2
    %v107 = vadd.f32 %v105, %v106
    %v108 = vrot.slane %v107, 1
    %v109 = vadd.f32 %v107, %v108
    %v110 = vadd.f32 %v88, %v90
    %v111 = vadd.f32 %v110, %v92
    %v112 = vadd.f32 %v111, %v94
    %v113 = vadd.f32 %v112, %v96
    %v114 = vadd.f32 %v113, %v98
    %v115 = vrot.slane %v114, 4
    %v116 = vadd.f32 %v114, %v115
    %v117 = vrot.slane %v116, 2
    %v118 = vadd.f32 %v116, %v117
    %v119 = vrot.slane %v118, 1
    %v120 = vadd.f32 %v118, %v119
    %v122 = vlaneseq
    %v123 = vshrl.u32 %v122, 7
    %v124 = vsub.s32 0, %v123
    %v125 = vrot.slane %v50, %v124
    %v126 = vlaneseq
    %v127 = vshrl.u32 %v126, 7
    %v128 = vsub.s32 1, %v127
    %v129 = vrot.slane %v50, %v128
    %v132 = vadd.f32 %v109, %v125
    %v133 = vadd.f32 %v120, %v129
    %v134 = vld [vmem:[%s0] sm:$0xff]
    %v135 = vlaneseq
    %v136 = vshrl.u32 %v135, 7
    %v137 = vsub.s32 0, %v136
    %v138 = vrot.slane %v132, %v137
    %v139 = vmul.f32 %v134, %v138
    %vm140 = vcmask 261120
    %v141 = vsel %vm140, %v139, 0.0
    %142 = vadd.xlane.f32.xlu0 %v141
    %v143 = vpop.xlane.xlu0 %142
    %v144 = vrot.slane %v143, 4
    %v145 = vmax.f32 %v143, %v144
    %v146 = vrot.slane %v145, 2
    %v147 = vmax.f32 %v145, %v146
    %v148 = vrot.slane %v147, 1
    %v149 = vmax.f32 %v147, %v148
    %v150 = vsub.f32 %v143, %v149
    %v151 = vmul.f32 %v150, 1.442695
    %v152 = vpow.pop %v151
    %v153 = vrot.slane %v152, 4
    %v154 = vadd.f32 %v152, %v153
    %v155 = vrot.slane %v154, 2
    %v156 = vadd.f32 %v154, %v155
    %v157 = vrot.slane %v156, 1
    %v158 = vadd.f32 %v156, %v157
    %v159 = vrcp.pop %v158
    %v160 = vmul.f32 %v152, %v159
    %v161 = vmul.f32 %v160, %v134
    %v162 = vsel %vm140, %v161, 0.0
    %v163 = vrot.slane %v162, 4
    %v164 = vadd.f32 %v162, %v163
    %v165 = vrot.slane %v164, 2
    %v166 = vadd.f32 %v164, %v165
    %v167 = vrot.slane %v166, 1
    %v168 = vadd.f32 %v166, %v167
    %vm169 = vcmask 253952
    %170 = vst.msk [vmem:[#allocation5] sm:$0x1] %vm169, %v168
    %v171 = vld [vmem:[%s1] sm:$0xff]
    %v172 = vld [vmem:[%s1 + $0x8] sm:$0xff]
    %v173 = vlaneseq
    %v174 = vshrl.u32 %v173, 7
    %v175 = vsub.s32 0, %v174
    %v176 = vrot.slane %v133, %v175
    %v177 = vmul.f32 %v171, %v176
    %v178 = vmul.f32 %v172, %v176
    %vm179 = vcmask 523264
    %v180 = vsel %vm179, %v177, 0.0
    %181 = vadd.xlane.f32.xlu0 %v180
    %v182 = vpop.xlane.xlu0 %181
    %v183 = vsel %vm179, %v178, 0.0
    %184 = vadd.xlane.f32.xlu0 %v183
    %v185 = vpop.xlane.xlu0 %184
    %v186 = vmax.f32 %v182, %v185
    %v187 = vrot.slane %v186, 4
    %v188 = vmax.f32 %v186, %v187
    %v189 = vrot.slane %v188, 2
    %v190 = vmax.f32 %v188, %v189
    %v191 = vrot.slane %v190, 1
    %v192 = vmax.f32 %v190, %v191
    %v193 = vsub.f32 %v182, %v192
    %v194 = vsub.f32 %v185, %v192
    %v195 = vmul.f32 %v193, 1.442695
    %v196 = vpow.pop %v195
    %v197 = vmul.f32 %v194, 1.442695
    %v198 = vpow.pop %v197
    %v199 = vadd.f32 %v196, %v198
    %v200 = vrot.slane %v199, 4
    %v201 = vadd.f32 %v199, %v200
    %v202 = vrot.slane %v201, 2
    %v203 = vadd.f32 %v201, %v202
    %v204 = vrot.slane %v203, 1
    %v205 = vadd.f32 %v203, %v204
    %v206 = vrcp.pop %v205
    %v207 = vmul.f32 %v196, %v206
    %v208 = vmul.f32 %v198, %v206
    %v209 = vmul.f32 %v207, %v171
    %v210 = vmul.f32 %v208, %v172
    %v211 = vsel %vm179, %v209, 0.0
    %v212 = vsel %vm179, %v210, 0.0
    %v213 = vadd.f32 %v211, %v212
    %v214 = vrot.slane %v213, 4
    %v215 = vadd.f32 %v213, %v214
    %v216 = vrot.slane %v215, 2
    %v217 = vadd.f32 %v215, %v216
    %v218 = vrot.slane %v217, 1
    %v219 = vadd.f32 %v217, %v218
    %vm220 = vcmask 516096
    %221 = vst.msk [vmem:[#allocation6] sm:$0x1] %vm220, %v219
    // Predicated region
    $region26: #{_forward.1} parent=1 // pred_check
      _
    $region27: #{_forward.1} parent=1 // pred_check_branch
      %223 = sbr.rel (0) target = $region29
    $region28: #{_forward.1} parent=1 // pred_region
      %s225 = ssub.s32 16, 16
      %226 = vsyncadd [#allocation4], %s225
      %s228 = sshll.u32 [#allocation5], 4
      %s229 = int_to_ptr.vmem [resolvable:$true] %s228
      %231 = dma.vmem_to_hbm [thread:$0]  %s229, 16, %s5, [#allocation4]
    $region29: #{_forward.1} parent=1 // pred_fallthru
      _
    // Predicated region
    $region30: #{_forward.1} parent=1 // pred_check
      _
    $region31: #{_forward.1} parent=1 // pred_check_branch
      %233 = sbr.rel (0) target = $region33
    $region32: #{_forward.1} parent=1 // pred_region
      %s235 = ssub.s32 16, 16
      %236 = vsyncadd [#allocation7], %s235
      %s238 = sshll.u32 [#allocation6], 4
      %s239 = int_to_ptr.vmem [resolvable:$true] %s238
      %241 = dma.vmem_to_hbm [thread:$0]  %s239, 16, %s6, [#allocation7]
    $region33: #{_forward.1} parent=1 // pred_fallthru
      _
    // Predicated region
    $region34: #{_forward.1} parent=1 // pred_check
      _
    $region35: #{_forward.1} parent=1 // pred_check_branch
      %243 = sbr.rel (0) target = $region37
    $region36: #{_forward.1} parent=1 // pred_region
      %244 = dma.done [#allocation4], 16
    $region37: #{_forward.1} parent=1 // pred_fallthru
      _
    // Predicated region
    $region38: #{_forward.1} parent=1 // pred_check
      _
    $region39: #{_forward.1} parent=1 // pred_check_branch
      %246 = sbr.rel (0) target = $region41
    $region40: #{_forward.1} parent=1 // pred_region
      %247 = dma.done [#allocation7], 16
    $region41: #{_forward.1} parent=1 // pred_fallthru
      _
    %248 = vsyncpa [#allocation3], 1
    %249 = vsyncpa [#allocation4], 1
    %250 = vsyncpa [#allocation7], 1

</llo_original>
